<compile_context>
chip_gen: v7x
topology: tpu7x:2x2x1
jax: 0.10.0
libtpu: 0.0.40
codegen_flags: <defaults>
</compile_context>

<pallas_src>
import functools

import jax
import jax.numpy as jnp
from jax.experimental import pallas as pl
from jax.experimental.pallas import tpu as pltpu

_H = 128            # hidden width
_IN = 4             # state dimension


def _dueling_kernel(x_ref, head_ref, w_ref, q_ref, *, n_action, batch):
    x = x_ref[...]                                   # (B, 4) f32

    # ---- f32 header: biases, w1 and the wv2 row (one aligned 8 KiB tile) ----
    head = head_ref[...]                             # (8, 256) f32
    b1      = head[0:1, 0:_H]                        # (1, 128)
    wv2_row = head[0:1, _H:2 * _H]                   # (1, 128)  wv2[:, 0]
    b2      = head[1:2, 0:_H]                        # (1, 128)
    ba2     = head[1:2, _H:2 * _H]                   # (1, 128)  lanes >= n_action are 0
    bva1    = head[2:3, :]                           # (1, 256)  [bv1 | ba1]
    bv2     = head[3:4, 0:_H]                        # (1, 128)  bv2 replicated
    w1      = head[4:8, 0:_H]                        # (4, 128)

    # ---- Linear(4, 128) + ReLU on the VPU: K=4 -> 4 broadcast FMAs (f32) ----
    f = b1
    for k in range(_IN):
        f = f + x[:, k:k + 1] * w1[k:k + 1, :]
    f = jnp.maximum(f, 0.0)                          # (B, 128) f32

    # ---- Linear(128, 128) + ReLU: bf16 MXU pass, f32 accumulate ----
    w2 = w_ref[0:_H, 0:_H]                           # (128, 128) bf16
    f = jnp.maximum(
        jnp.dot(f.astype(jnp.bfloat16), w2,
                preferred_element_type=jnp.float32) + b2, 0.0)   # (B, 128) f32

    # ---- Fused value/advantage stage 1: one 256-wide bf16 matmul + ReLU ----
    wva1 = w_ref[_H:2 * _H, :]                       # (128, 256) bf16 [wv1 | wa1]
    h = jnp.maximum(
        jnp.dot(f.astype(jnp.bfloat16), wva1,
                preferred_element_type=jnp.float32) + bva1, 0.0)  # (B, 256) f32
    h_v = h[:, 0:_H]                                 # (B, 128)
    h_a = h[:, _H:2 * _H]                            # (B, 128)

    # ---- Advantage head: bf16 MXU pass; padded lanes are exactly 0 ----
    wa2 = w_ref[0:_H, _H:2 * _H]                     # (128, 128) bf16 (zero-padded cols)
    a = jnp.dot(h_a.astype(jnp.bfloat16), wa2,
                preferred_element_type=jnp.float32) + ba2         # (B, 128) f32

    # ---- Value head on VPU + XLU lane-reduce (replaces near-empty MXU pass) ----
    v = jnp.sum(h_v * wv2_row, axis=-1, keepdims=True) + bv2      # (B, 128) broadcast

    # ---- Dueling combine with the GLOBAL advantage mean (PyTorch .mean()).
    # Lanes >= n_action of `a` are exactly zero by construction, so a plain
    # full-sum over the tile equals the sum over the real advantage lanes.
    a_mean = jnp.sum(a) / (batch * n_action)

    # Lane-dense (unmasked) store; real q-values live in lanes 0..n_action-1.
    q_ref[...] = v + (a - a_mean)


def pack_params(p, n_action):
    """Pack weights into an (8,256) f32 header + (256,256) bf16 slab.

    Layout (all (8,128)/(16,128)-tile aligned, no structural-zero bands):
      header row 0: [ b1            | wv2 row        ]
      header row 1: [ b2            | ba2 (0-padded) ]
      header row 2: [ bv1           | ba1            ]
      header row 3: [ bv2 broadcast | 0              ]
      header rows 4..7: w1 (4,128)  | 0
      slab rows   0..127: [ w2  | wa2 (0-padded cols) ]   (bf16)
      slab rows 128..255: [ wv1 | wa1                ]   (bf16)

    NOTE: correctness of the simplified advantage mean in the kernel depends
    on the wa2 / ba2 padding lanes (>= n_action) being exactly zero here.
    """
    assert 1 <= n_action <= _H, "n_action must be in [1, 128] for this layout"

    header = jnp.zeros((8, 2 * _H), jnp.float32)
    header = header.at[0, 0:_H].set(p["b1"])
    header = header.at[0, _H:2 * _H].set(p["wv2"][:, 0])
    header = header.at[1, 0:_H].set(p["b2"])
    header = header.at[1, _H:_H + n_action].set(p["ba2"])
    header = header.at[2, 0:_H].set(p["bv1"])
    header = header.at[2, _H:2 * _H].set(p["ba1"])
    header = header.at[3, 0:_H].set(jnp.full((_H,), p["bv2"][0], jnp.float32))
    header = header.at[4:8, 0:_H].set(p["w1"])

    wslab = jnp.zeros((2 * _H, 2 * _H), jnp.bfloat16)
    wslab = wslab.at[0:_H, 0:_H].set(p["w2"].astype(jnp.bfloat16))
    wslab = wslab.at[0:_H, _H:_H + n_action].set(p["wa2"].astype(jnp.bfloat16))
    wslab = wslab.at[_H:2 * _H, 0:_H].set(p["wv1"].astype(jnp.bfloat16))
    wslab = wslab.at[_H:2 * _H, _H:2 * _H].set(p["wa1"].astype(jnp.bfloat16))
    return header, wslab


def net_dueling_forward(state, header, wslab, n_action):
    """state: (B, 4) f32.  header/wslab: from pack_params (reused across calls)."""
    B = state.shape[0]
    vmem = pl.BlockSpec(memory_space=pltpu.MemorySpace.VMEM)
    q_padded = pl.pallas_call(
        functools.partial(_dueling_kernel, n_action=n_action, batch=B),
        out_shape=jax.ShapeDtypeStruct((B, _H), jnp.float32),
        in_specs=[vmem, vmem, vmem],
        out_specs=vmem,
    )(state, header, wslab)
    return q_padded[:, 0:n_action]


def init_params(key, n_action):
    """Deterministic init mimicking PyTorch Linear default U[-1/sqrt(fan_in), +]."""
    def linear(key, fan_in, fan_out):
        kw, kb = jax.random.split(key)
        bound = 1.0 / (fan_in ** 0.5)
        w = jax.random.uniform(kw, (fan_in, fan_out), jnp.float32, -bound, bound)
        b = jax.random.uniform(kb, (fan_out,), jnp.float32, -bound, bound)
        return w, b

    keys = jax.random.split(key, 6)
    w1, b1 = linear(keys[0], _IN, _H)
    w2, b2 = linear(keys[1], _H, _H)
    wv1, bv1 = linear(keys[2], _H, _H)
    wv2, bv2 = linear(keys[3], _H, 1)
    wa1, ba1 = linear(keys[4], _H, _H)
    wa2, ba2 = linear(keys[5], _H, n_action)
    return dict(w1=w1, b1=b1, w2=w2, b2=b2,
                wv1=wv1, bv1=bv1, wv2=wv2, bv2=bv2,
                wa1=wa1, ba1=ba1, wa2=wa2, ba2=ba2)


def reference_forward_f32(state, p):
    """Pure-f32 JAX reference of the PyTorch forward."""
    f = jnp.maximum(state @ p["w1"] + p["b1"], 0.0)
    f = jnp.maximum(f @ p["w2"] + p["b2"], 0.0)
    v = jnp.maximum(f @ p["wv1"] + p["bv1"], 0.0) @ p["wv2"] + p["bv2"]
    a = jnp.maximum(f @ p["wa1"] + p["ba1"], 0.0) @ p["wa2"] + p["ba2"]
    return v + (a - jnp.mean(a))


def reference_forward_matched(state, p):
    """Reference with the same numerics as the kernel (bf16 weights, f32 acc)."""
    def mm(x, w):
        return jnp.dot(x.astype(jnp.bfloat16), w.astype(jnp.bfloat16),
                       preferred_element_type=jnp.float32)

    f = p["b1"][None, :]
    for k in range(_IN):
        f = f + state[:, k:k + 1] * p["w1"][k:k + 1, :]
    f = jnp.maximum(f, 0.0)
    f = jnp.maximum(mm(f, p["w2"]) + p["b2"], 0.0)
    hv = jnp.maximum(mm(f, p["wv1"]) + p["bv1"], 0.0)
    ha = jnp.maximum(mm(f, p["wa1"]) + p["ba1"], 0.0)
    v = jnp.sum(hv * p["wv2"][:, 0][None, :], axis=-1, keepdims=True) + p["bv2"][None, :]
    a = mm(ha, p["wa2"]) + p["ba2"][None, :]
    return v + (a - jnp.mean(a))


if __name__ == "__main__":
    key = jax.random.PRNGKey(0)
    k_state, k_params = jax.random.split(key)

    B = 2           # batch
    n_action = 8    # number of actions

    state = jax.random.normal(k_state, (B, _IN), dtype=jnp.float32)
    params = init_params(k_params, n_action)
    header, wslab = pack_params(params, n_action)   # packed once; reused across calls

    q = net_dueling_forward(state, header, wslab, n_action)
    q = jax.block_until_ready(q)

    assert q.shape == (B, n_action)
    # Tight check vs a precision-matched (bf16-weight) reference.
    q_matched = reference_forward_matched(state, params)
    assert jnp.allclose(q, q_matched, atol=2e-3, rtol=2e-3), (q, q_matched)
    # Loose sanity check vs the full-f32 PyTorch-equivalent reference
    # (tolerance widened because the big weights are stored in bf16).
    q_f32 = reference_forward_f32(state, params)
    assert jnp.allclose(q, q_f32, atol=2e-2, rtol=2e-2), (q, q_f32)

    print("KERNEL_OK")
</pallas_src>

<mosaic_0001>
module attributes {stable_mosaic.version = 11 : i64} {
  func.func @_dueling_kernel(%arg0: memref<2x4xf32, #tpu.memory_space<vmem>>, %arg1: memref<8x256xf32, #tpu.memory_space<vmem>>, %arg2: memref<256x256xbf16, #tpu.memory_space<vmem>>, %arg3: memref<2x128xf32, #tpu.memory_space<vmem>>) attributes {dimension_semantics = [], scalar_prefetch = 0 : i64, scratch_operands = 0 : i64, tpu.core_type = #tpu.core_type<tc>} {
    %c0 = arith.constant 0 : index
    %c0_0 = arith.constant 0 : index
    %0 = vector.load %arg0[%c0, %c0_0] : memref<2x4xf32, #tpu.memory_space<vmem>>, vector<2x4xf32>
    %c0_1 = arith.constant 0 : index
    %c0_2 = arith.constant 0 : index
    %1 = vector.load %arg1[%c0_1, %c0_2] : memref<8x256xf32, #tpu.memory_space<vmem>>, vector<8x256xf32>
    %2 = vector.extract_strided_slice %1 {offsets = [0, 0], sizes = [1, 128], strides = [1, 1]} : vector<8x256xf32> to vector<1x128xf32>
    %3 = vector.extract_strided_slice %1 {offsets = [0, 128], sizes = [1, 128], strides = [1, 1]} : vector<8x256xf32> to vector<1x128xf32>
    %4 = vector.extract_strided_slice %1 {offsets = [1, 0], sizes = [1, 128], strides = [1, 1]} : vector<8x256xf32> to vector<1x128xf32>
    %5 = vector.extract_strided_slice %1 {offsets = [1, 128], sizes = [1, 128], strides = [1, 1]} : vector<8x256xf32> to vector<1x128xf32>
    %6 = vector.extract_strided_slice %1 {offsets = [2, 0], sizes = [1, 256], strides = [1, 1]} : vector<8x256xf32> to vector<1x256xf32>
    %7 = vector.extract_strided_slice %1 {offsets = [3, 0], sizes = [1, 128], strides = [1, 1]} : vector<8x256xf32> to vector<1x128xf32>
    %8 = vector.extract_strided_slice %1 {offsets = [4, 0], sizes = [4, 128], strides = [1, 1]} : vector<8x256xf32> to vector<4x128xf32>
    %9 = vector.extract_strided_slice %0 {offsets = [0, 0], sizes = [2, 1], strides = [1, 1]} : vector<2x4xf32> to vector<2x1xf32>
    %10 = vector.extract_strided_slice %8 {offsets = [0, 0], sizes = [1, 128], strides = [1, 1]} : vector<4x128xf32> to vector<1x128xf32>
    %11 = vector.broadcast %9 : vector<2x1xf32> to vector<2x128xf32>
    %12 = vector.broadcast %10 : vector<1x128xf32> to vector<2x128xf32>
    %13 = arith.mulf %11, %12 : vector<2x128xf32>
    %14 = vector.broadcast %2 : vector<1x128xf32> to vector<2x128xf32>
    %15 = arith.addf %14, %13 : vector<2x128xf32>
    %16 = vector.extract_strided_slice %0 {offsets = [0, 1], sizes = [2, 1], strides = [1, 1]} : vector<2x4xf32> to vector<2x1xf32>
    %17 = vector.extract_strided_slice %8 {offsets = [1, 0], sizes = [1, 128], strides = [1, 1]} : vector<4x128xf32> to vector<1x128xf32>
    %18 = vector.broadcast %16 : vector<2x1xf32> to vector<2x128xf32>
    %19 = vector.broadcast %17 : vector<1x128xf32> to vector<2x128xf32>
    %20 = arith.mulf %18, %19 : vector<2x128xf32>
    %21 = arith.addf %15, %20 : vector<2x128xf32>
    %22 = vector.extract_strided_slice %0 {offsets = [0, 2], sizes = [2, 1], strides = [1, 1]} : vector<2x4xf32> to vector<2x1xf32>
    %23 = vector.extract_strided_slice %8 {offsets = [2, 0], sizes = [1, 128], strides = [1, 1]} : vector<4x128xf32> to vector<1x128xf32>
    %24 = vector.broadcast %22 : vector<2x1xf32> to vector<2x128xf32>
    %25 = vector.broadcast %23 : vector<1x128xf32> to vector<2x128xf32>
    %26 = arith.mulf %24, %25 : vector<2x128xf32>
    %27 = arith.addf %21, %26 : vector<2x128xf32>
    %28 = vector.extract_strided_slice %0 {offsets = [0, 3], sizes = [2, 1], strides = [1, 1]} : vector<2x4xf32> to vector<2x1xf32>
    %29 = vector.extract_strided_slice %8 {offsets = [3, 0], sizes = [1, 128], strides = [1, 1]} : vector<4x128xf32> to vector<1x128xf32>
    %30 = vector.broadcast %28 : vector<2x1xf32> to vector<2x128xf32>
    %31 = vector.broadcast %29 : vector<1x128xf32> to vector<2x128xf32>
    %32 = arith.mulf %30, %31 : vector<2x128xf32>
    %33 = arith.addf %27, %32 : vector<2x128xf32>
    %cst = arith.constant 0.000000e+00 : f32
    %34 = vector.broadcast %cst : f32 to vector<2x128xf32>
    %35 = arith.maximumf %33, %34 : vector<2x128xf32>
    %c0_3 = arith.constant 0 : index
    %c0_4 = arith.constant 0 : index
    %36 = vector.load %arg2[%c0_3, %c0_4] : memref<256x256xbf16, #tpu.memory_space<vmem>>, vector<128x128xbf16>
    %37 = arith.truncf %35 : vector<2x128xf32> to vector<2x128xbf16>
    %cst_5 = arith.constant dense<0.000000e+00> : vector<2x128xf32>
    %38 = tpu.matmul %37, %36, %cst_5 {dimension_numbers = #tpu.dot_dimension_numbers<[1], [0], [0], [1], [0, 0, 1, 1], [], []>} : vector<2x128xbf16>, vector<128x128xbf16>, vector<2x128xf32> -> vector<2x128xf32>
    %39 = vector.broadcast %4 : vector<1x128xf32> to vector<2x128xf32>
    %40 = arith.addf %38, %39 : vector<2x128xf32>
    %cst_6 = arith.constant 0.000000e+00 : f32
    %41 = vector.broadcast %cst_6 : f32 to vector<2x128xf32>
    %42 = arith.maximumf %40, %41 : vector<2x128xf32>
    %c128 = arith.constant 128 : index
    %c0_7 = arith.constant 0 : index
    %43 = vector.load %arg2[%c128, %c0_7] : memref<256x256xbf16, #tpu.memory_space<vmem>>, vector<128x256xbf16>
    %44 = arith.truncf %42 : vector<2x128xf32> to vector<2x128xbf16>
    %cst_8 = arith.constant dense<0.000000e+00> : vector<2x256xf32>
    %45 = tpu.matmul %44, %43, %cst_8 {dimension_numbers = #tpu.dot_dimension_numbers<[1], [0], [0], [1], [0, 0, 1, 1], [], []>} : vector<2x128xbf16>, vector<128x256xbf16>, vector<2x256xf32> -> vector<2x256xf32>
    %46 = vector.broadcast %6 : vector<1x256xf32> to vector<2x256xf32>
    %47 = arith.addf %45, %46 : vector<2x256xf32>
    %cst_9 = arith.constant 0.000000e+00 : f32
    %48 = vector.broadcast %cst_9 : f32 to vector<2x256xf32>
    %49 = arith.maximumf %47, %48 : vector<2x256xf32>
    %50 = vector.extract_strided_slice %49 {offsets = [0, 0], sizes = [2, 128], strides = [1, 1]} : vector<2x256xf32> to vector<2x128xf32>
    %51 = vector.extract_strided_slice %49 {offsets = [0, 128], sizes = [2, 128], strides = [1, 1]} : vector<2x256xf32> to vector<2x128xf32>
    %c0_10 = arith.constant 0 : index
    %c128_11 = arith.constant 128 : index
    %52 = vector.load %arg2[%c0_10, %c128_11] : memref<256x256xbf16, #tpu.memory_space<vmem>>, vector<128x128xbf16>
    %53 = arith.truncf %51 : vector<2x128xf32> to vector<2x128xbf16>
    %cst_12 = arith.constant dense<0.000000e+00> : vector<2x128xf32>
    %54 = tpu.matmul %53, %52, %cst_12 {dimension_numbers = #tpu.dot_dimension_numbers<[1], [0], [0], [1], [0, 0, 1, 1], [], []>} : vector<2x128xbf16>, vector<128x128xbf16>, vector<2x128xf32> -> vector<2x128xf32>
    %55 = vector.broadcast %5 : vector<1x128xf32> to vector<2x128xf32>
    %56 = arith.addf %54, %55 : vector<2x128xf32>
    %57 = vector.broadcast %3 : vector<1x128xf32> to vector<2x128xf32>
    %58 = arith.mulf %50, %57 : vector<2x128xf32>
    %cst_13 = arith.constant dense<0.000000e+00> : vector<2xf32>
    %59 = vector.multi_reduction <add>, %58, %cst_13 [1] : vector<2x128xf32> to vector<2xf32>
    %60 = vector.shape_cast %59 : vector<2xf32> to vector<2x1xf32>
    %61 = vector.broadcast %60 : vector<2x1xf32> to vector<2x128xf32>
    %62 = vector.broadcast %7 : vector<1x128xf32> to vector<2x128xf32>
    %63 = arith.addf %61, %62 : vector<2x128xf32>
    %64 = vector.shape_cast %56 : vector<2x128xf32> to vector<1x2x128xf32>
    %cst_14 = arith.constant dense<0.000000e+00> : vector<1xf32>
    %65 = vector.multi_reduction <add>, %64, %cst_14 [1, 2] : vector<1x2x128xf32> to vector<1xf32>
    %66 = vector.shape_cast %65 : vector<1xf32> to vector<1x1x1xf32>
    %67 = vector.extract %66[0, 0, 0] : f32 from vector<1x1x1xf32>
    %cst_15 = arith.constant 1.600000e+01 : f32
    %68 = arith.divf %67, %cst_15 : f32
    %69 = vector.broadcast %68 : f32 to vector<2x128xf32>
    %70 = arith.subf %56, %69 : vector<2x128xf32>
    %71 = arith.addf %63, %70 : vector<2x128xf32>
    %c0_16 = arith.constant 0 : index
    %c0_17 = arith.constant 0 : index
    %72 = vector.load %arg3[%c0_16, %c0_17] : memref<2x128xf32, #tpu.memory_space<vmem>>, vector<2x128xf32>
    tpu.vector_store %arg3[%c0_16, %c0_17], %71 {strides = array<i32>} : memref<2x128xf32, #tpu.memory_space<vmem>>, vector<2x128xf32>,
    return
  }
}

</mosaic_0001>

<llo_original>
// kernel: tpu_custom_call.1
$region0: #{tpu_custom_call.1}
  #allocation0 [shape = 'u32[]', space=smem, size = 0x4, offset = 0x4, fixed_abs, tag = 'smem constant byte address 0x4 - core index']
  #allocation1 [shape = 'u32[144,128]{1,0:T(1,128)}', space=vmem, size = 0x12000, scoped, tag = 'internal scratch']
  %s0 = inlined_call_operand.hbm [shape: f32[2,4], index: 0, kind: input, shape index: {}]
  %s1 = inlined_call_operand.hbm [shape: f32[8,256], index: 1, kind: input, shape index: {}]
  %s2 = inlined_call_operand.hbm [shape: bf16[256,256], index: 2, kind: input, shape index: {}]
  %s3 = inlined_call_operand.hbm [shape: f32[2,128], index: 3, kind: output, shape index: {}]
  %s4 = sld [smem:[#allocation0]]
  $region34: #{tpu_custom_call.1} parent=0
    _
  %s6 = ssub.s32 1, %s4
  %s7 = scalar_select 0, %s6, %s4
  $region1: #{tpu_custom_call.1} parent=0
    #allocation2 [shape = 'u8[1024]{0}', space=vmem, size = 0x400, scoped, tag = 'input window, operand 0, single buffered']
    #allocation3 [shape = 's32[1]{0}', space=sflag, size = 0x4, scoped, tag = 'scoped memory for tpu_custom_call.1']
    #allocation4 [shape = 's32[1]{0}', space=sflag, size = 0x4, scoped, tag = 'scoped memory for tpu_custom_call.1']
    #allocation5 [shape = 'u8[8192]{0}', space=vmem, size = 0x2000, scoped, tag = 'input window, operand 1, single buffered']
    #allocation6 [shape = 's32[1]{0}', space=sflag, size = 0x4, scoped, tag = 'scoped memory for tpu_custom_call.1']
    #allocation7 [shape = 'u8[131072]{0}', space=vmem, size = 0x20000, scoped, tag = 'input window, operand 2, single buffered']
    #allocation8 [shape = 'u8[1024]{0}', space=vmem, size = 0x400, scoped, tag = 'output window, operand 0, single buffered']
    %8 = vsyncpa [#allocation3], 0
    %9 = vsyncpa [#allocation6], 0
    %10 = vsyncpa [#allocation4], 0
    // Predicated region
    $region2: #{tpu_custom_call.1} parent=1 // pred_check
      _
    $region3: #{tpu_custom_call.1} parent=1 // pred_check_branch
      %12 = sbr.rel (0) target = $region5
    $region4: #{tpu_custom_call.1} parent=1 // pred_region
      %s14 = ssub.s32 32, 32
      %15 = vsyncadd [#allocation3], %s14
      %s17 = sshll.u32 [#allocation2], 4
      %s18 = int_to_ptr.vmem [resolvable:$true] %s17
      %20 = dma.hbm_to_vmem [thread:$0]  %s0, 32, %s18, [#allocation3]
    $region5: #{tpu_custom_call.1} parent=1 // pred_fallthru
      _
    // Predicated region
    $region6: #{tpu_custom_call.1} parent=1 // pred_check
      _
    $region7: #{tpu_custom_call.1} parent=1 // pred_check_branch
      %22 = sbr.rel (0) target = $region9
    $region8: #{tpu_custom_call.1} parent=1 // pred_region
      %s24 = ssub.s32 256, 256
      %25 = vsyncadd [#allocation6], %s24
      %s27 = sshll.u32 [#allocation5], 4
      %s28 = int_to_ptr.vmem [resolvable:$true] %s27
      %30 = dma.hbm_to_vmem [thread:$0]  %s1, 256, %s28, [#allocation6]
    $region9: #{tpu_custom_call.1} parent=1 // pred_fallthru
      _
    // Predicated region
    $region10: #{tpu_custom_call.1} parent=1 // pred_check
      _
    $region11: #{tpu_custom_call.1} parent=1 // pred_check_branch
      %32 = sbr.rel (0) target = $region13
    $region12: #{tpu_custom_call.1} parent=1 // pred_region
      %s34 = ssub.s32 4096, 4096
      %35 = vsyncadd [#allocation6], %s34
      %s36 = sshll.u32 [#allocation7], 4
      %s37 = int_to_ptr.vmem [resolvable:$true] %s36
      %42 = dma.hbm_to_vmem [thread:$0]  %s2, 4096, %s37, [#allocation6], 128, 128, 8
    $region13: #{tpu_custom_call.1} parent=1 // pred_fallthru
      _
    // Predicated region
    $region14: #{tpu_custom_call.1} parent=1 // pred_check
      _
    $region15: #{tpu_custom_call.1} parent=1 // pred_check_branch
      %44 = sbr.rel (0) target = $region17
    $region16: #{tpu_custom_call.1} parent=1 // pred_region
      %45 = dma.done [#allocation3], 32
    $region17: #{tpu_custom_call.1} parent=1 // pred_fallthru
      _
    // Predicated region
    $region18: #{tpu_custom_call.1} parent=1 // pred_check
      _
    $region19: #{tpu_custom_call.1} parent=1 // pred_check_branch
      %47 = sbr.rel (0) target = $region21
    $region20: #{tpu_custom_call.1} parent=1 // pred_region
      %48 = dma.done [#allocation6], 256
    $region21: #{tpu_custom_call.1} parent=1 // pred_fallthru
      _
    // Predicated region
    $region22: #{tpu_custom_call.1} parent=1 // pred_check
      _
    $region23: #{tpu_custom_call.1} parent=1 // pred_check_branch
      %50 = sbr.rel (0) target = $region25
    $region24: #{tpu_custom_call.1} parent=1 // pred_region
      %51 = dma.done [#allocation6], 4096
    $region25: #{tpu_custom_call.1} parent=1 // pred_fallthru
      _
    %v53 = vld [vmem:[#allocation2] sm:$0x3]
    %v54 = vld [vmem:[#allocation5] sm:$0xff]
    %v55 = vld [vmem:[#allocation5 + $0x8] sm:$0xff]
    %57 = vset.pattern.permute.xlu0 0
    %58 = vperm.xlu0 %57, %v53
    %v59 = vpop.permute.xlu0 %58
    %v61 = vlaneseq
    %v62 = vshrl.u32 %v61, 7
    %v63 = vsub.s32 4, %v62
    %v64 = vrot.slane %v54, %v63
    %v65 = vmul.f32 %v59, %v64
    %v66 = vlaneseq
    %v67 = vshrl.u32 %v66, 7
    %v68 = vsub.s32 0, %v67
    %v69 = vrot.slane %v54, %v68
    %v70 = vadd.f32 %v69, %v65
    %71 = vset.pattern.permute.xlu0 1
    %72 = vperm.xlu0 %71, %v53
    %v73 = vpop.permute.xlu0 %72
    %v75 = vlaneseq
    %v76 = vshrl.u32 %v75, 7
    %v77 = vsub.s32 5, %v76
    %v78 = vrot.slane %v54, %v77
    %v79 = vmul.f32 %v73, %v78
    %v80 = vadd.f32 %v70, %v79
    %81 = vset.pattern.permute.xlu0 2
    %82 = vperm.xlu0 %81, %v53
    %v83 = vpop.permute.xlu0 %82
    %v85 = vlaneseq
    %v86 = vshrl.u32 %v85, 7
    %v87 = vsub.s32 6, %v86
    %v88 = vrot.slane %v54, %v87
    %v89 = vmul.f32 %v83, %v88
    %v90 = vadd.f32 %v80, %v89
    %91 = vset.pattern.permute.xlu0 3
    %92 = vperm.xlu0 %91, %v53
    %v93 = vpop.permute.xlu0 %92
    %v95 = vlaneseq
    %v96 = vshrl.u32 %v95, 7
    %v97 = vsub.s32 7, %v96
    %v98 = vrot.slane %v54, %v97
    %v99 = vmul.f32 %v93, %v98
    %v100 = vadd.f32 %v90, %v99
    %v101 = vmax.f32 %v100, 0.0
    %v102 = vld [vmem:[#allocation7] sm:$0xf]
    %v103 = vld [vmem:[#allocation7 + $0x8] sm:$0xf]
    %v104 = vld [vmem:[#allocation7 + $0x10] sm:$0xf]
    %v105 = vld [vmem:[#allocation7 + $0x18] sm:$0xf]
    %v106 = vld [vmem:[#allocation7 + $0x20] sm:$0xf]
    %v107 = vld [vmem:[#allocation7 + $0x28] sm:$0xf]
    %v108 = vld [vmem:[#allocation7 + $0x30] sm:$0xf]
    %v109 = vld [vmem:[#allocation7 + $0x38] sm:$0xf]
    %v110 = vld [vmem:[#allocation7 + $0x40] sm:$0xf]
    %v111 = vld [vmem:[#allocation7 + $0x48] sm:$0xf]
    %v112 = vld [vmem:[#allocation7 + $0x50] sm:$0xf]
    %v113 = vld [vmem:[#allocation7 + $0x58] sm:$0xf]
    %v114 = vld [vmem:[#allocation7 + $0x60] sm:$0xf]
    %v115 = vld [vmem:[#allocation7 + $0x68] sm:$0xf]
    %v116 = vld [vmem:[#allocation7 + $0x70] sm:$0xf]
    %v117 = vld [vmem:[#allocation7 + $0x78] sm:$0xf]
    %v118 = vpack.c.bf16 %v101, %v101
    %v119 = vlaneseq
    %v120 = vshrl.u32 %v119, 7
    %v121 = vsub.s32 1, %v120
    %v122 = vrot.slane %v54, %v121
    %v139 = vunpack.c.l.b16 %v102
    %v140 = vunpack.c.l.b16 %v103
    %v141 = vunpack.c.l.b16 %v104
    %v142 = vunpack.c.l.b16 %v105
    %v143 = vunpack.c.l.b16 %v106
    %v144 = vunpack.c.l.b16 %v107
    %v145 = vunpack.c.l.b16 %v108
    %v146 = vunpack.c.l.b16 %v109
    %v147 = vunpack.c.l.b16 %v110
    %v148 = vunpack.c.l.b16 %v111
    %v149 = vunpack.c.l.b16 %v112
    %v150 = vunpack.c.l.b16 %v113
    %v151 = vunpack.c.l.b16 %v114
    %v152 = vunpack.c.l.b16 %v115
    %v153 = vunpack.c.l.b16 %v116
    %v154 = vunpack.c.l.b16 %v117
    %v155 = vpack.c.b16 %v140, %v139
    %v156 = vpack.c.b16 %v142, %v141
    %v157 = vpack.c.b16 %v144, %v143
    %v158 = vpack.c.b16 %v146, %v145
    %v159 = vpack.c.b16 %v148, %v147
    %v160 = vpack.c.b16 %v150, %v149
    %v161 = vpack.c.b16 %v152, %v151
    %v162 = vpack.c.b16 %v154, %v153
    %171 = vmatprep.subr.bf16.mxu0 0
    %172 = vmatpush1.bf16.msra.mxu0 %v155
    %173 = vmatprep.subr.bf16.mxu0 0
    %174 = vmatpush1.bf16.msra.mxu0 %v156
    %175 = vmatprep.subr.bf16.mxu0 0
    %176 = vmatpush1.bf16.msra.mxu0 %v157
    %177 = vmatprep.subr.bf16.mxu0 0
    %178 = vmatpush1.bf16.msra.mxu0 %v158
    %179 = vmatprep.subr.bf16.mxu0 0
    %180 = vmatpush1.bf16.msra.mxu0 %v159
    %181 = vmatprep.subr.bf16.mxu0 0
    %182 = vmatpush1.bf16.msra.mxu0 %v160
    %183 = vmatprep.subr.bf16.mxu0 0
    %184 = vmatpush1.bf16.msra.mxu0 %v161
    %185 = vmatprep.subr.bf16.mxu0 0
    %186 = vmatpush1.bf16.msra.mxu0 %v162
    %187 = vmatprep.subr.bf16.mxu0 0
    %188 = vmatpush1.bf16.msra.mxu0 0
    %189 = vmatprep.subr.bf16.mxu0 0
    %190 = vmatpush1.bf16.msra.mxu0 0
    %191 = vmatprep.subr.bf16.mxu0 0
    %192 = vmatpush1.bf16.msra.mxu0 0
    %193 = vmatprep.subr.bf16.mxu0 0
    %194 = vmatpush1.bf16.msra.mxu0 0
    %195 = vmatprep.subr.bf16.mxu0 0
    %196 = vmatpush1.bf16.msra.mxu0 0
    %197 = vmatprep.subr.bf16.mxu0 0
    %198 = vmatpush1.bf16.msra.mxu0 0
    %199 = vmatprep.subr.bf16.mxu0 0
    %200 = vmatpush1.bf16.msra.mxu0 0
    %201 = vmatprep.subr.bf16.mxu0 0
    %202 = vmatpush1.bf16.msra.mxu0 0
    %203 = vmatprep.mubr.bf16.mxu0 0
    %204 = vmatmul.mubr.bf16.gmra.mrb[0].mxu0 %v118
    %v205 = vpop.f32.mrb[0].mxu0
    %v206 = vadd.f32 %v122, %v205
    %v207 = vpop.f32.mrb[0].mxu0
    %v208 = vpop.f32.mrb[0].mxu0
    %v209 = vpop.f32.mrb[0].mxu0
    %210 = vdwg.mxu0
    %v211 = vmax.f32 %v206, 0.0
    %v212 = vld [vmem:[#allocation7 + $0x80] sm:$0xff]
    %v213 = vld [vmem:[#allocation7 + $0x88] sm:$0xff]
    %v214 = vld [vmem:[#allocation7 + $0x90] sm:$0xff]
    %v215 = vld [vmem:[#allocation7 + $0x98] sm:$0xff]
    %v216 = vld [vmem:[#allocation7 + $0xa0] sm:$0xff]
    %v217 = vld [vmem:[#allocation7 + $0xa8] sm:$0xff]
    %v218 = vld [vmem:[#allocation7 + $0xb0] sm:$0xff]
    %v219 = vld [vmem:[#allocation7 + $0xb8] sm:$0xff]
    %v220 = vld [vmem:[#allocation7 + $0xc0] sm:$0xff]
    %v221 = vld [vmem:[#allocation7 + $0xc8] sm:$0xff]
    %v222 = vld [vmem:[#allocation7 + $0xd0] sm:$0xff]
    %v223 = vld [vmem:[#allocation7 + $0xd8] sm:$0xff]
    %v224 = vld [vmem:[#allocation7 + $0xe0] sm:$0xff]
    %v225 = vld [vmem:[#allocation7 + $0xe8] sm:$0xff]
    %v226 = vld [vmem:[#allocation7 + $0xf0] sm:$0xff]
    %v227 = vld [vmem:[#allocation7 + $0xf8] sm:$0xff]
    %v228 = vpack.c.bf16 %v211, %v211
    %v229 = vlaneseq
    %v230 = vshrl.u32 %v229, 7
    %v231 = vsub.s32 2, %v230
    %v232 = vrot.slane %v54, %v231
    %v233 = vlaneseq
    %v234 = vshrl.u32 %v233, 7
    %v235 = vsub.s32 2, %v234
    %v236 = vrot.slane %v55, %v235
    %v253 = vunpack.c.l.b16 %v212
    %v254 = vunpack.c.h.b16 %v212
    %v255 = vunpack.c.l.b16 %v213
    %v256 = vunpack.c.h.b16 %v213
    %v257 = vunpack.c.l.b16 %v214
    %v258 = vunpack.c.h.b16 %v214
    %v259 = vunpack.c.l.b16 %v215
    %v260 = vunpack.c.h.b16 %v215
    %v261 = vunpack.c.l.b16 %v216
    %v262 = vunpack.c.h.b16 %v216
    %v263 = vunpack.c.l.b16 %v217
    %v264 = vunpack.c.h.b16 %v217
    %v265 = vunpack.c.l.b16 %v218
    %v266 = vunpack.c.h.b16 %v218
    %v267 = vunpack.c.l.b16 %v219
    %v268 = vunpack.c.h.b16 %v219
    %v269 = vunpack.c.l.b16 %v220
    %v270 = vunpack.c.h.b16 %v220
    %v271 = vunpack.c.l.b16 %v221
    %v272 = vunpack.c.h.b16 %v221
    %v273 = vunpack.c.l.b16 %v222
    %v274 = vunpack.c.h.b16 %v222
    %v275 = vunpack.c.l.b16 %v223
    %v276 = vunpack.c.h.b16 %v223
    %v277 = vunpack.c.l.b16 %v224
    %v278 = vunpack.c.h.b16 %v224
    %v279 = vunpack.c.l.b16 %v225
    %v280 = vunpack.c.h.b16 %v225
    %v281 = vunpack.c.l.b16 %v226
    %v282 = vunpack.c.h.b16 %v226
    %v283 = vunpack.c.l.b16 %v227
    %v284 = vunpack.c.h.b16 %v227
    %v285 = vpack.c.b16 %v255, %v253
    %v286 = vpack.c.b16 %v256, %v254
    %v287 = vpack.c.b16 %v259, %v257
    %v288 = vpack.c.b16 %v260, %v258
    %v289 = vpack.c.b16 %v263, %v261
    %v290 = vpack.c.b16 %v264, %v262
    %v291 = vpack.c.b16 %v267, %v265
    %v292 = vpack.c.b16 %v268, %v266
    %v293 = vpack.c.b16 %v271, %v269
    %v294 = vpack.c.b16 %v272, %v270
    %v295 = vpack.c.b16 %v275, %v273
    %v296 = vpack.c.b16 %v276, %v274
    %v297 = vpack.c.b16 %v279, %v277
    %v298 = vpack.c.b16 %v280, %v278
    %v299 = vpack.c.b16 %v283, %v281
    %v300 = vpack.c.b16 %v284, %v282
    %317 = vmatprep.subr.bf16.mxu0 %v286
    %318 = vmatpush1.bf16.msra.mxu0 %v285
    %319 = vmatprep.subr.bf16.mxu0 %v288
    %320 = vmatpush1.bf16.msra.mxu0 %v287
    %321 = vmatprep.subr.bf16.mxu0 %v290
    %322 = vmatpush1.bf16.msra.mxu0 %v289
    %323 = vmatprep.subr.bf16.mxu0 %v292
    %324 = vmatpush1.bf16.msra.mxu0 %v291
    %325 = vmatprep.subr.bf16.mxu0 %v294
    %326 = vmatpush1.bf16.msra.mxu0 %v293
    %327 = vmatprep.subr.bf16.mxu0 %v296
    %328 = vmatpush1.bf16.msra.mxu0 %v295
    %329 = vmatprep.subr.bf16.mxu0 %v298
    %330 = vmatpush1.bf16.msra.mxu0 %v297
    %331 = vmatprep.subr.bf16.mxu0 %v300
    %332 = vmatpush1.bf16.msra.mxu0 %v299
    %333 = vmatprep.subr.bf16.mxu0 0
    %334 = vmatpush1.bf16.msra.mxu0 0
    %335 = vmatprep.subr.bf16.mxu0 0
    %336 = vmatpush1.bf16.msra.mxu0 0
    %337 = vmatprep.subr.bf16.mxu0 0
    %338 = vmatpush1.bf16.msra.mxu0 0
    %339 = vmatprep.subr.bf16.mxu0 0
    %340 = vmatpush1.bf16.msra.mxu0 0
    %341 = vmatprep.subr.bf16.mxu0 0
    %342 = vmatpush1.bf16.msra.mxu0 0
    %343 = vmatprep.subr.bf16.mxu0 0
    %344 = vmatpush1.bf16.msra.mxu0 0
    %345 = vmatprep.subr.bf16.mxu0 0
    %346 = vmatpush1.bf16.msra.mxu0 0
    %347 = vmatprep.subr.bf16.mxu0 0
    %348 = vmatpush1.bf16.msra.mxu0 0
    %349 = vmatprep.mubr.bf16.mxu0 0
    %350 = vmatmul.mubr.bf16.gmra.mrb[0].mxu0 %v228
    %v351 = vpop.f32.mrb[0].mxu0
    %v352 = vadd.f32 %v232, %v351
    %v353 = vpop.f32.mrb[0].mxu0
    %v354 = vadd.f32 %v236, %v353
    %v355 = vpop.f32.mrb[0].mxu0
    %v356 = vpop.f32.mrb[0].mxu0
    %357 = vdwg.mxu0
    %v358 = vmax.f32 %v352, 0.0
    %v359 = vmax.f32 %v354, 0.0
    %v360 = vld [vmem:[#allocation7 + $0x4] sm:$0xf]
    %v361 = vld [vmem:[#allocation7 + $0xc] sm:$0xf]
    %v362 = vld [vmem:[#allocation7 + $0x14] sm:$0xf]
    %v363 = vld [vmem:[#allocation7 + $0x1c] sm:$0xf]
    %v364 = vld [vmem:[#allocation7 + $0x24] sm:$0xf]
    %v365 = vld [vmem:[#allocation7 + $0x2c] sm:$0xf]
    %v366 = vld [vmem:[#allocation7 + $0x34] sm:$0xf]
    %v367 = vld [vmem:[#allocation7 + $0x3c] sm:$0xf]
    %v368 = vld [vmem:[#allocation7 + $0x44] sm:$0xf]
    %v369 = vld [vmem:[#allocation7 + $0x4c] sm:$0xf]
    %v370 = vld [vmem:[#allocation7 + $0x54] sm:$0xf]
    %v371 = vld [vmem:[#allocation7 + $0x5c] sm:$0xf]
    %v372 = vld [vmem:[#allocation7 + $0x64] sm:$0xf]
    %v373 = vld [vmem:[#allocation7 + $0x6c] sm:$0xf]
    %v374 = vld [vmem:[#allocation7 + $0x74] sm:$0xf]
    %v375 = vld [vmem:[#allocation7 + $0x7c] sm:$0xf]
    %v376 = vpack.c.bf16 %v359, %v359
    %v377 = vlaneseq
    %v378 = vshrl.u32 %v377, 7
    %v379 = vsub.s32 1, %v378
    %v380 = vrot.slane %v55, %v379
    %v397 = vunpack.c.l.b16 %v360
    %v398 = vunpack.c.l.b16 %v361
    %v399 = vunpack.c.l.b16 %v362
    %v400 = vunpack.c.l.b16 %v363
    %v401 = vunpack.c.l.b16 %v364
    %v402 = vunpack.c.l.b16 %v365
    %v403 = vunpack.c.l.b16 %v366
    %v404 = vunpack.c.l.b16 %v367
    %v405 = vunpack.c.l.b16 %v368
    %v406 = vunpack.c.l.b16 %v369
    %v407 = vunpack.c.l.b16 %v370
    %v408 = vunpack.c.l.b16 %v371
    %v409 = vunpack.c.l.b16 %v372
    %v410 = vunpack.c.l.b16 %v373
    %v411 = vunpack.c.l.b16 %v374
    %v412 = vunpack.c.l.b16 %v375
    %v413 = vpack.c.b16 %v398, %v397
    %v414 = vpack.c.b16 %v400, %v399
    %v415 = vpack.c.b16 %v402, %v401
    %v416 = vpack.c.b16 %v404, %v403
    %v417 = vpack.c.b16 %v406, %v405
    %v418 = vpack.c.b16 %v408, %v407
    %v419 = vpack.c.b16 %v410, %v409
    %v420 = vpack.c.b16 %v412, %v411
    %429 = vmatprep.subr.bf16.mxu0 0
    %430 = vmatpush1.bf16.msra.mxu0 %v413
    %431 = vmatprep.subr.bf16.mxu0 0
    %432 = vmatpush1.bf16.msra.mxu0 %v414
    %433 = vmatprep.subr.bf16.mxu0 0
    %434 = vmatpush1.bf16.msra.mxu0 %v415
    %435 = vmatprep.subr.bf16.mxu0 0
    %436 = vmatpush1.bf16.msra.mxu0 %v416
    %437 = vmatprep.subr.bf16.mxu0 0
    %438 = vmatpush1.bf16.msra.mxu0 %v417
    %439 = vmatprep.subr.bf16.mxu0 0
    %440 = vmatpush1.bf16.msra.mxu0 %v418
    %441 = vmatprep.subr.bf16.mxu0 0
    %442 = vmatpush1.bf16.msra.mxu0 %v419
    %443 = vmatprep.subr.bf16.mxu0 0
    %444 = vmatpush1.bf16.msra.mxu0 %v420
    %445 = vmatprep.subr.bf16.mxu0 0
    %446 = vmatpush1.bf16.msra.mxu0 0
    %447 = vmatprep.subr.bf16.mxu0 0
    %448 = vmatpush1.bf16.msra.mxu0 0
    %449 = vmatprep.subr.bf16.mxu0 0
    %450 = vmatpush1.bf16.msra.mxu0 0
    %451 = vmatprep.subr.bf16.mxu0 0
    %452 = vmatpush1.bf16.msra.mxu0 0
    %453 = vmatprep.subr.bf16.mxu0 0
    %454 = vmatpush1.bf16.msra.mxu0 0
    %455 = vmatprep.subr.bf16.mxu0 0
    %456 = vmatpush1.bf16.msra.mxu0 0
    %457 = vmatprep.subr.bf16.mxu0 0
    %458 = vmatpush1.bf16.msra.mxu0 0
    %459 = vmatprep.subr.bf16.mxu0 0
    %460 = vmatpush1.bf16.msra.mxu0 0
    %461 = vmatprep.mubr.bf16.mxu0 0
    %462 = vmatmul.mubr.bf16.gmra.mrb[0].mxu0 %v376
    %v463 = vpop.f32.mrb[0].mxu0
    %v464 = vadd.f32 %v380, %v463
    %v465 = vpop.f32.mrb[0].mxu0
    %v466 = vpop.f32.mrb[0].mxu0
    %v467 = vpop.f32.mrb[0].mxu0
    %468 = vdwg.mxu0
    %v469 = vlaneseq
    %v470 = vshrl.u32 %v469, 7
    %v471 = vsub.s32 0, %v470
    %v472 = vrot.slane %v55, %v471
    %v473 = vmul.f32 %v358, %v472
    %vm474 = vcmask 1041408
    %v475 = vsel %vm474, %v473, 0.0
    %476 = vadd.xlane.f32.xlu0 %v475
    %v477 = vpop.xlane.xlu0 %476
    %v478 = vlaneseq
    %v479 = vshrl.u32 %v478, 7
    %v480 = vsub.s32 3, %v479
    %v481 = vrot.slane %v54, %v480
    %v482 = vadd.f32 %v477, %v481
    %v483 = vsel %vm474, %v464, 0.0
    %484 = vadd.xlane.f32.xlu0 %v483
    %v485 = vpop.xlane.xlu0 %484
    %v486 = vrot.slane %v485, 4
    %v487 = vadd.f32 %v485, %v486
    %v488 = vrot.slane %v487, 2
    %v489 = vadd.f32 %v487, %v488
    %v490 = vrot.slane %v489, 1
    %v491 = vadd.f32 %v489, %v490
    %s492 = vtos %v491
    %v493 = vrcp.pop 16.0
    %s494 = vtos %v493
    %s495 = smul.f32 %s492, %s494
    %v496 = vstv %s495
    %v497 = vsub.f32 %v464, %v496
    %v498 = vadd.f32 %v482, %v497
    %499 = vst [vmem:[#allocation8] sm:$0x3] %v498
    // Predicated region
    $region26: #{tpu_custom_call.1} parent=1 // pred_check
      _
    $region27: #{tpu_custom_call.1} parent=1 // pred_check_branch
      %501 = sbr.rel (0) target = $region29
    $region28: #{tpu_custom_call.1} parent=1 // pred_region
      %s503 = ssub.s32 32, 32
      %504 = vsyncadd [#allocation4], %s503
      %s506 = sshll.u32 [#allocation8], 4
      %s507 = int_to_ptr.vmem [resolvable:$true] %s506
      %509 = dma.vmem_to_hbm [thread:$0]  %s507, 32, %s3, [#allocation4]
    $region29: #{tpu_custom_call.1} parent=1 // pred_fallthru
      _
    // Predicated region
    $region30: #{tpu_custom_call.1} parent=1 // pred_check
      _
    $region31: #{tpu_custom_call.1} parent=1 // pred_check_branch
      %511 = sbr.rel (0) target = $region33
    $region32: #{tpu_custom_call.1} parent=1 // pred_region
      %512 = dma.done [#allocation4], 32
    $region33: #{tpu_custom_call.1} parent=1 // pred_fallthru
      _
    %513 = vsyncpa [#allocation3], 1
    %514 = vsyncpa [#allocation6], 1
    %515 = vsyncpa [#allocation4], 1

</llo_original>
